<compile_context>
chip_gen: v7x
topology: tpu7x:2x2x1
jax: 0.10.0
libtpu: 0.0.40
codegen_flags: <defaults>
</compile_context>

<pallas_src>
import math

import jax
import jax.numpy as jnp
from jax.experimental import pallas as pl
from jax.experimental.pallas import tpu as pltpu

ENC_FILTERS = 2
ENC_KERNEL = 7
D_MODEL = 1024
FC_INNER = 32
NUM_CLASSES = 2
BN_EPS = 1e-5
T_IN = D_MODEL // ENC_FILTERS          # 512 time samples -> 2 * 512 = 1024 flat features


def _fused_forward_kernel(x_ref, cp_ref, w1_ref, tail_ref, out_ref):
    # x_ref   : [N, T]   raw input rows, lane-aligned (T = 512)        (VMEM, f32)
    # cp_ref  : [F*K+F]  packed conv weights then conv biases          (SMEM, f32)
    # w1_ref  : [D_MODEL, FC_INNER]  BN-folded first Linear weight     (VMEM, bf16)
    # tail_ref: [2+NUM_CLASSES, FC_INNER] packed b1' / b2 / w2^T       (VMEM, f32)
    # out_ref : [N, NUM_CLASSES] softmax probabilities                 (VMEM, f32)
    n, t = x_ref.shape
    pad = ENC_KERNEL // 2

    x = x_ref[...]
    lane = jax.lax.broadcasted_iota(jnp.int32, (n, t), 1)

    # --- EEG_Encoder: Conv1d(1 -> F, k=K, 'same') + ReLU, channel-major flatten -----
    # Taps are hoisted: each shifted window xk[i] = x[i + d] (zero outside [0, T))
    # is built once via an XLU roll + edge mask and reused by every filter.
    accs = [jnp.zeros((n, t), jnp.float32) for _ in range(ENC_FILTERS)]
    for k in range(ENC_KERNEL):
        d = k - pad                                     # source offset of this tap
        if d == 0:
            xk = x
        else:
            xk = pltpu.roll(x, shift=(-d) % t, axis=1)  # xk[i] = x[(i + d) mod T]
            if d > 0:
                xk = jnp.where(lane < t - d, xk, 0.0)   # zero wrapped tail lanes
            else:
                xk = jnp.where(lane >= -d, xk, 0.0)     # zero wrapped head lanes
        for f in range(ENC_FILTERS):
            accs[f] = accs[f] + cp_ref[f * ENC_KERNEL + k] * xk

    feats = [jnp.maximum(accs[f] + cp_ref[ENC_FILTERS * ENC_KERNEL + f], 0.0)
             for f in range(ENC_FILTERS)]
    feat = jnp.concatenate(feats, axis=-1)              # [N, 1024], channel-major

    # --- fc_out: (BatchNorm folded into w1'/b1') -> Linear(1024,32) -> ReLU ----------
    tail = tail_ref[...]                                # [2+C, 32]
    b1 = tail[0:1, :]                                   # [1, 32]
    h = jnp.dot(feat.astype(jnp.bfloat16), w1_ref[...],
                preferred_element_type=jnp.float32) + b1
    h = jnp.maximum(h, 0.0)                             # [N, 32]

    # --- Linear(32, 2) on the VPU (broadcast-mul + lane reduce) -> Softmax(dim=1) ----
    b2 = tail[1:2, :NUM_CLASSES]                        # [1, 2]
    w2t = tail[2:2 + NUM_CLASSES, :]                    # [2, 32]  (= w2^T)
    cols = [jnp.sum(h * w2t[c:c + 1, :], axis=-1, keepdims=True)
            for c in range(NUM_CLASSES)]
    logits = jnp.concatenate(cols, axis=-1) + b2        # [N, 2]

    logits = logits - jnp.max(logits, axis=-1, keepdims=True)
    e = jnp.exp(logits)
    out_ref[...] = e / jnp.sum(e, axis=-1, keepdims=True)   # exact divide (no approx)


def prepare_inference_params(params):
    """One-time offline prep: BN fold, bf16 cast, operand packing."""
    # Fold eval-mode BatchNorm1d into the first Linear.
    s = params['bn_g'] * jax.lax.rsqrt(params['bn_v'] + BN_EPS)          # [D]
    w1_folded = (params['w1'] * s[:, None]).astype(jnp.bfloat16)          # [D, 32] bf16
    b1_folded = (params['bn_b'] - params['bn_m'] * s) @ params['w1'] + params['b1']

    # Conv weights + biases packed into one tiny SMEM vector.
    conv_pack = jnp.concatenate(
        [params['enc_w'].reshape(-1), params['enc_b']]).astype(jnp.float32)

    # Remaining tiny operands packed into one VMEM slab: b1', b2, w2^T.
    tail = jnp.zeros((2 + NUM_CLASSES, FC_INNER), jnp.float32)
    tail = tail.at[0, :].set(b1_folded)
    tail = tail.at[1, :NUM_CLASSES].set(params['b2'])
    tail = tail.at[2:, :].set(params['w2'].T)

    return dict(conv_pack=conv_pack, w1=w1_folded, tail=tail)


def eeg_cnn_ch_best_forward(x, packed):
    # x mirrors the PyTorch call convention: forward indexes x[0] -> [B, 1, T].
    x0 = x[0]
    b, cin, t = x0.shape
    assert cin == 1, "EEG_Encoder approximation expects a single input channel"
    x2d = x0.reshape(b, t)                               # [B, T], lane-aligned, no pad

    vm = pl.BlockSpec(memory_space=pltpu.MemorySpace.VMEM)
    sm = pl.BlockSpec(memory_space=pltpu.MemorySpace.SMEM)
    return pl.pallas_call(
        _fused_forward_kernel,
        out_shape=jax.ShapeDtypeStruct((b, NUM_CLASSES), jnp.float32),
        in_specs=[vm, sm, vm, vm],
        out_specs=vm,
    )(x2d, packed['conv_pack'], packed['w1'], packed['tail'])


def init_params(key):
    k = jax.random.split(key, 4)
    return dict(
        # PyTorch Conv1d weight is [out_ch, in_ch=1, K]; in_ch squeezed here.
        enc_w=0.3 * jax.random.normal(k[0], (ENC_FILTERS, ENC_KERNEL), jnp.float32),
        enc_b=0.1 * jax.random.normal(k[1], (ENC_FILTERS,), jnp.float32),
        bn_g=jnp.ones((D_MODEL,), jnp.float32),
        bn_b=jnp.zeros((D_MODEL,), jnp.float32),
        bn_m=jnp.zeros((D_MODEL,), jnp.float32),
        bn_v=jnp.ones((D_MODEL,), jnp.float32),
        # PyTorch Linear stores [out, in]; stored here as [in, out].
        w1=(1.0 / math.sqrt(D_MODEL))
            * jax.random.normal(k[2], (D_MODEL, FC_INNER), jnp.float32),
        b1=jnp.zeros((FC_INNER,), jnp.float32),
        w2=(1.0 / math.sqrt(FC_INNER))
            * jax.random.normal(k[3], (FC_INNER, NUM_CLASSES), jnp.float32),
        b2=jnp.zeros((NUM_CLASSES,), jnp.float32),
    )


if __name__ == "__main__":
    key = jax.random.PRNGKey(0)
    kx, kp = jax.random.split(key)
    B = 8
    x = jax.random.normal(kx, (1, B, 1, T_IN), jnp.float32)   # forward takes x[0]

    params = init_params(kp)
    packed = prepare_inference_params(params)                 # one-time, offline

    fwd = jax.jit(lambda xx: eeg_cnn_ch_best_forward(xx, packed))
    out = jax.block_until_ready(fwd(x))

    assert out.shape == (B, NUM_CLASSES)
    assert bool(jnp.all(jnp.isfinite(out)))
    # softmax rows should sum to ~1
    assert bool(jnp.all(jnp.abs(jnp.sum(out, axis=1) - 1.0) < 1e-4))
    print("KERNEL_OK")
</pallas_src>

<mosaic_0001>
module attributes {stable_mosaic.version = 11 : i64} {
  func.func @_fused_forward_kernel(%arg0: memref<8x512xf32, #tpu.memory_space<vmem>>, %arg1: memref<16xf32, #tpu.memory_space<smem>>, %arg2: memref<1024x32xbf16, #tpu.memory_space<vmem>>, %arg3: memref<4x32xf32, #tpu.memory_space<vmem>>, %arg4: memref<8x2xf32, #tpu.memory_space<vmem>>) attributes {dimension_semantics = [], scalar_prefetch = 0 : i64, scratch_operands = 0 : i64, tpu.core_type = #tpu.core_type<tc>} {
    %c0 = arith.constant 0 : index
    %c0_0 = arith.constant 0 : index
    %0 = vector.load %arg0[%c0, %c0_0] : memref<8x512xf32, #tpu.memory_space<vmem>>, vector<8x512xf32>
    %1 = tpu.iota {dimensions = array<i32: 1>} : vector<8x512xi32>
    %cst = arith.constant 0.000000e+00 : f32
    %2 = vector.broadcast %cst : f32 to vector<8x512xf32>
    %cst_1 = arith.constant 0.000000e+00 : f32
    %3 = vector.broadcast %cst_1 : f32 to vector<8x512xf32>
    %c3_i32 = arith.constant 3 : i32
    %4 = tpu.dynamic_rotate %0 by %c3_i32 dim 1 : vector<8x512xf32>, i32 -> vector<8x512xf32>
    %c3_i32_2 = arith.constant 3 : i32
    %5 = vector.broadcast %c3_i32_2 : i32 to vector<8x512xi32>
    %6 = arith.cmpi sge, %1, %5 : vector<8x512xi32>
    %cst_3 = arith.constant 0.000000e+00 : f32
    %7 = vector.broadcast %cst_3 : f32 to vector<8x512xf32>
    %8 = arith.select %6, %4, %7 : vector<8x512xi1>, vector<8x512xf32>
    %c0_4 = arith.constant 0 : index
    %9 = memref.load %arg1[%c0_4] : memref<16xf32, #tpu.memory_space<smem>>
    %10 = vector.broadcast %9 : f32 to vector<8x512xf32>
    %11 = arith.mulf %10, %8 : vector<8x512xf32>
    %12 = arith.addf %2, %11 : vector<8x512xf32>
    %c7 = arith.constant 7 : index
    %13 = memref.load %arg1[%c7] : memref<16xf32, #tpu.memory_space<smem>>
    %14 = vector.broadcast %13 : f32 to vector<8x512xf32>
    %15 = arith.mulf %14, %8 : vector<8x512xf32>
    %16 = arith.addf %3, %15 : vector<8x512xf32>
    %c2_i32 = arith.constant 2 : i32
    %17 = tpu.dynamic_rotate %0 by %c2_i32 dim 1 : vector<8x512xf32>, i32 -> vector<8x512xf32>
    %c2_i32_5 = arith.constant 2 : i32
    %18 = vector.broadcast %c2_i32_5 : i32 to vector<8x512xi32>
    %19 = arith.cmpi sge, %1, %18 : vector<8x512xi32>
    %cst_6 = arith.constant 0.000000e+00 : f32
    %20 = vector.broadcast %cst_6 : f32 to vector<8x512xf32>
    %21 = arith.select %19, %17, %20 : vector<8x512xi1>, vector<8x512xf32>
    %c1 = arith.constant 1 : index
    %22 = memref.load %arg1[%c1] : memref<16xf32, #tpu.memory_space<smem>>
    %23 = vector.broadcast %22 : f32 to vector<8x512xf32>
    %24 = arith.mulf %23, %21 : vector<8x512xf32>
    %25 = arith.addf %12, %24 : vector<8x512xf32>
    %c8 = arith.constant 8 : index
    %26 = memref.load %arg1[%c8] : memref<16xf32, #tpu.memory_space<smem>>
    %27 = vector.broadcast %26 : f32 to vector<8x512xf32>
    %28 = arith.mulf %27, %21 : vector<8x512xf32>
    %29 = arith.addf %16, %28 : vector<8x512xf32>
    %c1_i32 = arith.constant 1 : i32
    %30 = tpu.dynamic_rotate %0 by %c1_i32 dim 1 : vector<8x512xf32>, i32 -> vector<8x512xf32>
    %c1_i32_7 = arith.constant 1 : i32
    %31 = vector.broadcast %c1_i32_7 : i32 to vector<8x512xi32>
    %32 = arith.cmpi sge, %1, %31 : vector<8x512xi32>
    %cst_8 = arith.constant 0.000000e+00 : f32
    %33 = vector.broadcast %cst_8 : f32 to vector<8x512xf32>
    %34 = arith.select %32, %30, %33 : vector<8x512xi1>, vector<8x512xf32>
    %c2 = arith.constant 2 : index
    %35 = memref.load %arg1[%c2] : memref<16xf32, #tpu.memory_space<smem>>
    %36 = vector.broadcast %35 : f32 to vector<8x512xf32>
    %37 = arith.mulf %36, %34 : vector<8x512xf32>
    %38 = arith.addf %25, %37 : vector<8x512xf32>
    %c9 = arith.constant 9 : index
    %39 = memref.load %arg1[%c9] : memref<16xf32, #tpu.memory_space<smem>>
    %40 = vector.broadcast %39 : f32 to vector<8x512xf32>
    %41 = arith.mulf %40, %34 : vector<8x512xf32>
    %42 = arith.addf %29, %41 : vector<8x512xf32>
    %c3 = arith.constant 3 : index
    %43 = memref.load %arg1[%c3] : memref<16xf32, #tpu.memory_space<smem>>
    %44 = vector.broadcast %43 : f32 to vector<8x512xf32>
    %45 = arith.mulf %44, %0 : vector<8x512xf32>
    %46 = arith.addf %38, %45 : vector<8x512xf32>
    %c10 = arith.constant 10 : index
    %47 = memref.load %arg1[%c10] : memref<16xf32, #tpu.memory_space<smem>>
    %48 = vector.broadcast %47 : f32 to vector<8x512xf32>
    %49 = arith.mulf %48, %0 : vector<8x512xf32>
    %50 = arith.addf %42, %49 : vector<8x512xf32>
    %c511_i32 = arith.constant 511 : i32
    %51 = tpu.dynamic_rotate %0 by %c511_i32 dim 1 : vector<8x512xf32>, i32 -> vector<8x512xf32>
    %c511_i32_9 = arith.constant 511 : i32
    %52 = vector.broadcast %c511_i32_9 : i32 to vector<8x512xi32>
    %53 = arith.cmpi slt, %1, %52 : vector<8x512xi32>
    %cst_10 = arith.constant 0.000000e+00 : f32
    %54 = vector.broadcast %cst_10 : f32 to vector<8x512xf32>
    %55 = arith.select %53, %51, %54 : vector<8x512xi1>, vector<8x512xf32>
    %c4 = arith.constant 4 : index
    %56 = memref.load %arg1[%c4] : memref<16xf32, #tpu.memory_space<smem>>
    %57 = vector.broadcast %56 : f32 to vector<8x512xf32>
    %58 = arith.mulf %57, %55 : vector<8x512xf32>
    %59 = arith.addf %46, %58 : vector<8x512xf32>
    %c11 = arith.constant 11 : index
    %60 = memref.load %arg1[%c11] : memref<16xf32, #tpu.memory_space<smem>>
    %61 = vector.broadcast %60 : f32 to vector<8x512xf32>
    %62 = arith.mulf %61, %55 : vector<8x512xf32>
    %63 = arith.addf %50, %62 : vector<8x512xf32>
    %c510_i32 = arith.constant 510 : i32
    %64 = tpu.dynamic_rotate %0 by %c510_i32 dim 1 : vector<8x512xf32>, i32 -> vector<8x512xf32>
    %c510_i32_11 = arith.constant 510 : i32
    %65 = vector.broadcast %c510_i32_11 : i32 to vector<8x512xi32>
    %66 = arith.cmpi slt, %1, %65 : vector<8x512xi32>
    %cst_12 = arith.constant 0.000000e+00 : f32
    %67 = vector.broadcast %cst_12 : f32 to vector<8x512xf32>
    %68 = arith.select %66, %64, %67 : vector<8x512xi1>, vector<8x512xf32>
    %c5 = arith.constant 5 : index
    %69 = memref.load %arg1[%c5] : memref<16xf32, #tpu.memory_space<smem>>
    %70 = vector.broadcast %69 : f32 to vector<8x512xf32>
    %71 = arith.mulf %70, %68 : vector<8x512xf32>
    %72 = arith.addf %59, %71 : vector<8x512xf32>
    %c12 = arith.constant 12 : index
    %73 = memref.load %arg1[%c12] : memref<16xf32, #tpu.memory_space<smem>>
    %74 = vector.broadcast %73 : f32 to vector<8x512xf32>
    %75 = arith.mulf %74, %68 : vector<8x512xf32>
    %76 = arith.addf %63, %75 : vector<8x512xf32>
    %c509_i32 = arith.constant 509 : i32
    %77 = tpu.dynamic_rotate %0 by %c509_i32 dim 1 : vector<8x512xf32>, i32 -> vector<8x512xf32>
    %c509_i32_13 = arith.constant 509 : i32
    %78 = vector.broadcast %c509_i32_13 : i32 to vector<8x512xi32>
    %79 = arith.cmpi slt, %1, %78 : vector<8x512xi32>
    %cst_14 = arith.constant 0.000000e+00 : f32
    %80 = vector.broadcast %cst_14 : f32 to vector<8x512xf32>
    %81 = arith.select %79, %77, %80 : vector<8x512xi1>, vector<8x512xf32>
    %c6 = arith.constant 6 : index
    %82 = memref.load %arg1[%c6] : memref<16xf32, #tpu.memory_space<smem>>
    %83 = vector.broadcast %82 : f32 to vector<8x512xf32>
    %84 = arith.mulf %83, %81 : vector<8x512xf32>
    %85 = arith.addf %72, %84 : vector<8x512xf32>
    %c13 = arith.constant 13 : index
    %86 = memref.load %arg1[%c13] : memref<16xf32, #tpu.memory_space<smem>>
    %87 = vector.broadcast %86 : f32 to vector<8x512xf32>
    %88 = arith.mulf %87, %81 : vector<8x512xf32>
    %89 = arith.addf %76, %88 : vector<8x512xf32>
    %c14 = arith.constant 14 : index
    %90 = memref.load %arg1[%c14] : memref<16xf32, #tpu.memory_space<smem>>
    %91 = vector.broadcast %90 : f32 to vector<8x512xf32>
    %92 = arith.addf %85, %91 : vector<8x512xf32>
    %cst_15 = arith.constant 0.000000e+00 : f32
    %93 = vector.broadcast %cst_15 : f32 to vector<8x512xf32>
    %94 = arith.maximumf %92, %93 : vector<8x512xf32>
    %c15 = arith.constant 15 : index
    %95 = memref.load %arg1[%c15] : memref<16xf32, #tpu.memory_space<smem>>
    %96 = vector.broadcast %95 : f32 to vector<8x512xf32>
    %97 = arith.addf %89, %96 : vector<8x512xf32>
    %cst_16 = arith.constant 0.000000e+00 : f32
    %98 = vector.broadcast %cst_16 : f32 to vector<8x512xf32>
    %99 = arith.maximumf %97, %98 : vector<8x512xf32>
    %100 = tpu.concatenate %94, %99 in 1 : vector<8x512xf32>, vector<8x512xf32> -> vector<8x1024xf32>
    %c0_17 = arith.constant 0 : index
    %c0_18 = arith.constant 0 : index
    %101 = vector.load %arg3[%c0_17, %c0_18] : memref<4x32xf32, #tpu.memory_space<vmem>>, vector<4x32xf32>
    %102 = vector.extract_strided_slice %101 {offsets = [0, 0], sizes = [1, 32], strides = [1, 1]} : vector<4x32xf32> to vector<1x32xf32>
    %103 = arith.truncf %100 : vector<8x1024xf32> to vector<8x1024xbf16>
    %c0_19 = arith.constant 0 : index
    %c0_20 = arith.constant 0 : index
    %104 = vector.load %arg2[%c0_19, %c0_20] : memref<1024x32xbf16, #tpu.memory_space<vmem>>, vector<1024x32xbf16>
    %cst_21 = arith.constant dense<0.000000e+00> : vector<8x32xf32>
    %105 = tpu.matmul %103, %104, %cst_21 {dimension_numbers = #tpu.dot_dimension_numbers<[1], [0], [0], [1], [0, 0, 1, 1], [], []>} : vector<8x1024xbf16>, vector<1024x32xbf16>, vector<8x32xf32> -> vector<8x32xf32>
    %106 = vector.broadcast %102 : vector<1x32xf32> to vector<8x32xf32>
    %107 = arith.addf %105, %106 : vector<8x32xf32>
    %cst_22 = arith.constant 0.000000e+00 : f32
    %108 = vector.broadcast %cst_22 : f32 to vector<8x32xf32>
    %109 = arith.maximumf %107, %108 : vector<8x32xf32>
    %110 = vector.extract_strided_slice %101 {offsets = [1, 0], sizes = [1, 2], strides = [1, 1]} : vector<4x32xf32> to vector<1x2xf32>
    %111 = vector.extract_strided_slice %101 {offsets = [2, 0], sizes = [2, 32], strides = [1, 1]} : vector<4x32xf32> to vector<2x32xf32>
    %112 = vector.extract_strided_slice %111 {offsets = [0, 0], sizes = [1, 32], strides = [1, 1]} : vector<2x32xf32> to vector<1x32xf32>
    %113 = vector.broadcast %112 : vector<1x32xf32> to vector<8x32xf32>
    %114 = arith.mulf %109, %113 : vector<8x32xf32>
    %cst_23 = arith.constant dense<0.000000e+00> : vector<8xf32>
    %115 = vector.multi_reduction <add>, %114, %cst_23 [1] : vector<8x32xf32> to vector<8xf32>
    %116 = vector.shape_cast %115 : vector<8xf32> to vector<8x1xf32>
    %117 = vector.extract_strided_slice %111 {offsets = [1, 0], sizes = [1, 32], strides = [1, 1]} : vector<2x32xf32> to vector<1x32xf32>
    %118 = vector.broadcast %117 : vector<1x32xf32> to vector<8x32xf32>
    %119 = arith.mulf %109, %118 : vector<8x32xf32>
    %cst_24 = arith.constant dense<0.000000e+00> : vector<8xf32>
    %120 = vector.multi_reduction <add>, %119, %cst_24 [1] : vector<8x32xf32> to vector<8xf32>
    %121 = vector.shape_cast %120 : vector<8xf32> to vector<8x1xf32>
    %122 = tpu.concatenate %116, %121 in 1 : vector<8x1xf32>, vector<8x1xf32> -> vector<8x2xf32>
    %123 = vector.broadcast %110 : vector<1x2xf32> to vector<8x2xf32>
    %124 = arith.addf %122, %123 : vector<8x2xf32>
    %cst_25 = arith.constant dense<0xFF800000> : vector<8xf32>
    %125 = vector.multi_reduction <maximumf>, %124, %cst_25 [1] : vector<8x2xf32> to vector<8xf32>
    %126 = vector.shape_cast %125 : vector<8xf32> to vector<8x1xf32>
    %127 = vector.broadcast %126 : vector<8x1xf32> to vector<8x2xf32>
    %128 = arith.subf %124, %127 : vector<8x2xf32>
    %129 = math.exp %128 : vector<8x2xf32>
    %cst_26 = arith.constant dense<0.000000e+00> : vector<8xf32>
    %130 = vector.multi_reduction <add>, %129, %cst_26 [1] : vector<8x2xf32> to vector<8xf32>
    %131 = vector.shape_cast %130 : vector<8xf32> to vector<8x1xf32>
    %132 = vector.broadcast %131 : vector<8x1xf32> to vector<8x2xf32>
    %133 = arith.divf %129, %132 : vector<8x2xf32>
    %c0_27 = arith.constant 0 : index
    %c0_28 = arith.constant 0 : index
    %134 = vector.load %arg4[%c0_27, %c0_28] : memref<8x2xf32, #tpu.memory_space<vmem>>, vector<8x2xf32>
    tpu.vector_store %arg4[%c0_27, %c0_28], %133 {strides = array<i32>} : memref<8x2xf32, #tpu.memory_space<vmem>>, vector<8x2xf32>,
    return
  }
}

</mosaic_0001>

<llo_original>
// kernel: _lambda_.1
$region0: #{_lambda_.1}
  #allocation0 [shape = 'u32[]', space=smem, size = 0x4, offset = 0x4, fixed_abs, tag = 'smem constant byte address 0x4 - core index']
  #allocation1 [shape = 'u32[144,128]{1,0:T(1,128)}', space=vmem, size = 0x12000, scoped, tag = 'internal scratch']
  %s0 = inlined_call_operand.vmem [shape: f32[8,512], index: 0, kind: input, shape index: {}]
  %s1 = inlined_call_operand.vmem [shape: f32[16], index: 1, kind: input, shape index: {}]
  %s2 = inlined_call_operand.hbm [shape: bf16[1024,32], index: 2, kind: input, shape index: {}]
  %s3 = inlined_call_operand.vmem [shape: f32[4,32], index: 3, kind: input, shape index: {}]
  %s4 = inlined_call_operand.vmem [shape: f32[8,2], index: 4, kind: output, shape index: {}]
  %s5 = sld [smem:[#allocation0]]
  $region34: #{_lambda_.1} parent=0
    _
  %s7 = ssub.s32 1, %s5
  %s8 = scalar_select 0, %s7, %s5
  $region1: #{_lambda_.1} parent=0
    #allocation2 [shape = 'u8[512]{0}', space=smem, size = 0x200, scoped, tag = 'input window, operand 1, single buffered']
    #allocation3 [shape = 's32[1]{0}', space=sflag, size = 0x4, scoped, tag = 'scoped memory for _lambda_.1']
    #allocation4 [shape = 's32[1]{0}', space=sflag, size = 0x4, scoped, tag = 'scoped memory for _lambda_.1']
    #allocation5 [shape = 'u8[262144]{0}', space=vmem, size = 0x40000, scoped, tag = 'input window, operand 2, single buffered']
    %9 = vsyncpa [#allocation4], 0
    %10 = vsyncpa [#allocation3], 0
    // Predicated region
    $region2: #{_lambda_.1} parent=1 // pred_check
      _
    $region3: #{_lambda_.1} parent=1 // pred_check_branch
      %12 = sbr.rel (0) target = $region5
    $region4: #{_lambda_.1} parent=1 // pred_region
      _
    $region5: #{_lambda_.1} parent=1 // pred_fallthru
      _
    // Predicated region
    $region6: #{_lambda_.1} parent=1 // pred_check
      _
    $region7: #{_lambda_.1} parent=1 // pred_check_branch
      %14 = sbr.rel (0) target = $region9
    $region8: #{_lambda_.1} parent=1 // pred_region
      %s16 = ssub.s32 16, 16
      %17 = vsyncadd [#allocation4], %s16
      %s19 = sshll.u32 %s1, 4
      %s20 = int_to_ptr.vmem [resolvable:$true] %s19
      %22 = dma.vmem_to_smem %s20, 16, [#allocation2], [#allocation4]
    $region9: #{_lambda_.1} parent=1 // pred_fallthru
      _
    // Predicated region
    $region10: #{_lambda_.1} parent=1 // pred_check
      _
    $region11: #{_lambda_.1} parent=1 // pred_check_branch
      %24 = sbr.rel (0) target = $region13
    $region12: #{_lambda_.1} parent=1 // pred_region
      %s26 = ssub.s32 8192, 8192
      %27 = vsyncadd [#allocation3], %s26
      %s28 = sshll.u32 [#allocation5], 4
      %s29 = int_to_ptr.vmem [resolvable:$true] %s28
      %34 = dma.hbm_to_vmem [thread:$0]  %s2, 8192, %s29, [#allocation3], 64, 64, 4
    $region13: #{_lambda_.1} parent=1 // pred_fallthru
      _
    // Predicated region
    $region14: #{_lambda_.1} parent=1 // pred_check
      _
    $region15: #{_lambda_.1} parent=1 // pred_check_branch
      %36 = sbr.rel (0) target = $region17
    $region16: #{_lambda_.1} parent=1 // pred_region
      _
    $region17: #{_lambda_.1} parent=1 // pred_fallthru
      _
    // Predicated region
    $region18: #{_lambda_.1} parent=1 // pred_check
      _
    $region19: #{_lambda_.1} parent=1 // pred_check_branch
      %38 = sbr.rel (0) target = $region21
    $region20: #{_lambda_.1} parent=1 // pred_region
      %39 = dma.done [#allocation4], 16
    $region21: #{_lambda_.1} parent=1 // pred_fallthru
      _
    // Predicated region
    $region22: #{_lambda_.1} parent=1 // pred_check
      _
    $region23: #{_lambda_.1} parent=1 // pred_check_branch
      %41 = sbr.rel (0) target = $region25
    $region24: #{_lambda_.1} parent=1 // pred_region
      %42 = dma.done [#allocation3], 8192
    $region25: #{_lambda_.1} parent=1 // pred_fallthru
      _
    %43 = sfence
    %v45 = vld [vmem:[%s0] sm:$0xff]
    %v46 = vld [vmem:[%s0 + $0x8] sm:$0xff]
    %v47 = vld [vmem:[%s0 + $0x10] sm:$0xff]
    %v48 = vld [vmem:[%s0 + $0x18] sm:$0xff]
    %v49 = vlaneseq
    %v50 = vand.u32 %v49, 127
    %v51 = vadd.s32 %v50, 128
    %v52 = vadd.s32 %v50, 256
    %v53 = vadd.s32 %v50, 384
    %54 = vrot.lane.b32.xlu0 %v45, 3
    %v55 = vpop.permute.xlu0 %54
    %56 = vrot.lane.b32.xlu0 %v46, 3
    %v57 = vpop.permute.xlu0 %56
    %58 = vrot.lane.b32.xlu0 %v47, 3
    %v59 = vpop.permute.xlu0 %58
    %60 = vrot.lane.b32.xlu0 %v48, 3
    %v61 = vpop.permute.xlu0 %60
    %vm62 = vcmp.lt.s32.totalorder %v50, 3
    %v63 = vsel %vm62, %v59, %v61
    %v64 = vsel %vm62, %v57, %v59
    %v65 = vsel %vm62, %v55, %v57
    %v66 = vsel %vm62, %v61, %v55
    %vm67 = vcmp.ge.s32.totalorder %v50, 3
    %vm68 = vcmp.ge.s32.totalorder %v51, 3
    %vm69 = vcmp.ge.s32.totalorder %v52, 3
    %vm70 = vcmp.ge.s32.totalorder %v53, 3
    %v71 = vsel %vm67, %v66, 0.0
    %v72 = vsel %vm68, %v65, 0.0
    %v73 = vsel %vm69, %v64, 0.0
    %v74 = vsel %vm70, %v63, 0.0
    %s75 = sld [smem:[#allocation2]]
    %v76 = vstv %s75
    %v77 = vmul.f32 %v76, %v71
    %v78 = vmul.f32 %v76, %v72
    %v79 = vmul.f32 %v76, %v73
    %v80 = vmul.f32 %v76, %v74
    %v81 = vadd.f32 %v77, 0.0
    %v82 = vadd.f32 %v78, 0.0
    %v83 = vadd.f32 %v79, 0.0
    %v84 = vadd.f32 %v80, 0.0
    %s85 = sld [smem:[#allocation2 + $0x7]]
    %v86 = vstv %s85
    %v87 = vmul.f32 %v86, %v71
    %v88 = vmul.f32 %v86, %v72
    %v89 = vmul.f32 %v86, %v73
    %v90 = vmul.f32 %v86, %v74
    %v91 = vadd.f32 %v87, 0.0
    %v92 = vadd.f32 %v88, 0.0
    %v93 = vadd.f32 %v89, 0.0
    %v94 = vadd.f32 %v90, 0.0
    %95 = vrot.lane.b32.xlu0 %v45, 2
    %v96 = vpop.permute.xlu0 %95
    %97 = vrot.lane.b32.xlu0 %v46, 2
    %v98 = vpop.permute.xlu0 %97
    %99 = vrot.lane.b32.xlu0 %v47, 2
    %v100 = vpop.permute.xlu0 %99
    %101 = vrot.lane.b32.xlu0 %v48, 2
    %v102 = vpop.permute.xlu0 %101
    %vm103 = vcmp.lt.s32.totalorder %v50, 2
    %v104 = vsel %vm103, %v100, %v102
    %v105 = vsel %vm103, %v98, %v100
    %v106 = vsel %vm103, %v96, %v98
    %v107 = vsel %vm103, %v102, %v96
    %vm108 = vcmp.ge.s32.totalorder %v50, 2
    %vm109 = vcmp.ge.s32.totalorder %v51, 2
    %vm110 = vcmp.ge.s32.totalorder %v52, 2
    %vm111 = vcmp.ge.s32.totalorder %v53, 2
    %v112 = vsel %vm108, %v107, 0.0
    %v113 = vsel %vm109, %v106, 0.0
    %v114 = vsel %vm110, %v105, 0.0
    %v115 = vsel %vm111, %v104, 0.0
    %s116 = sld [smem:[#allocation2 + $0x1]]
    %v117 = vstv %s116
    %v118 = vmul.f32 %v117, %v112
    %v119 = vmul.f32 %v117, %v113
    %v120 = vmul.f32 %v117, %v114
    %v121 = vmul.f32 %v117, %v115
    %v122 = vadd.f32 %v81, %v118
    %v123 = vadd.f32 %v82, %v119
    %v124 = vadd.f32 %v83, %v120
    %v125 = vadd.f32 %v84, %v121
    %s126 = sld [smem:[#allocation2 + $0x8]]
    %v127 = vstv %s126
    %v128 = vmul.f32 %v127, %v112
    %v129 = vmul.f32 %v127, %v113
    %v130 = vmul.f32 %v127, %v114
    %v131 = vmul.f32 %v127, %v115
    %v132 = vadd.f32 %v91, %v128
    %v133 = vadd.f32 %v92, %v129
    %v134 = vadd.f32 %v93, %v130
    %v135 = vadd.f32 %v94, %v131
    %136 = vrot.lane.b32.xlu0 %v45, 1
    %v137 = vpop.permute.xlu0 %136
    %138 = vrot.lane.b32.xlu0 %v46, 1
    %v139 = vpop.permute.xlu0 %138
    %140 = vrot.lane.b32.xlu0 %v47, 1
    %v141 = vpop.permute.xlu0 %140
    %142 = vrot.lane.b32.xlu0 %v48, 1
    %v143 = vpop.permute.xlu0 %142
    %vm144 = vcmp.lt.s32.totalorder %v50, 1
    %v145 = vsel %vm144, %v141, %v143
    %v146 = vsel %vm144, %v139, %v141
    %v147 = vsel %vm144, %v137, %v139
    %v148 = vsel %vm144, %v143, %v137
    %vm149 = vcmp.ge.s32.totalorder %v50, 1
    %vm150 = vcmp.ge.s32.totalorder %v51, 1
    %vm151 = vcmp.ge.s32.totalorder %v52, 1
    %vm152 = vcmp.ge.s32.totalorder %v53, 1
    %v153 = vsel %vm149, %v148, 0.0
    %v154 = vsel %vm150, %v147, 0.0
    %v155 = vsel %vm151, %v146, 0.0
    %v156 = vsel %vm152, %v145, 0.0
    %s157 = sld [smem:[#allocation2 + $0x2]]
    %v158 = vstv %s157
    %v159 = vmul.f32 %v158, %v153
    %v160 = vmul.f32 %v158, %v154
    %v161 = vmul.f32 %v158, %v155
    %v162 = vmul.f32 %v158, %v156
    %v163 = vadd.f32 %v122, %v159
    %v164 = vadd.f32 %v123, %v160
    %v165 = vadd.f32 %v124, %v161
    %v166 = vadd.f32 %v125, %v162
    %s167 = sld [smem:[#allocation2 + $0x9]]
    %v168 = vstv %s167
    %v169 = vmul.f32 %v168, %v153
    %v170 = vmul.f32 %v168, %v154
    %v171 = vmul.f32 %v168, %v155
    %v172 = vmul.f32 %v168, %v156
    %v173 = vadd.f32 %v132, %v169
    %v174 = vadd.f32 %v133, %v170
    %v175 = vadd.f32 %v134, %v171
    %v176 = vadd.f32 %v135, %v172
    %s177 = sld [smem:[#allocation2 + $0x3]]
    %v178 = vstv %s177
    %v179 = vmul.f32 %v178, %v45
    %v180 = vmul.f32 %v178, %v46
    %v181 = vmul.f32 %v178, %v47
    %v182 = vmul.f32 %v178, %v48
    %v183 = vadd.f32 %v163, %v179
    %v184 = vadd.f32 %v164, %v180
    %v185 = vadd.f32 %v165, %v181
    %v186 = vadd.f32 %v166, %v182
    %s187 = sld [smem:[#allocation2 + $0xa]]
    %v188 = vstv %s187
    %v189 = vmul.f32 %v188, %v45
    %v190 = vmul.f32 %v188, %v46
    %v191 = vmul.f32 %v188, %v47
    %v192 = vmul.f32 %v188, %v48
    %v193 = vadd.f32 %v173, %v189
    %v194 = vadd.f32 %v174, %v190
    %v195 = vadd.f32 %v175, %v191
    %v196 = vadd.f32 %v176, %v192
    %197 = vrot.lane.b32.xlu0 %v45, 127
    %v198 = vpop.permute.xlu0 %197
    %199 = vrot.lane.b32.xlu0 %v46, 127
    %v200 = vpop.permute.xlu0 %199
    %201 = vrot.lane.b32.xlu0 %v47, 127
    %v202 = vpop.permute.xlu0 %201
    %203 = vrot.lane.b32.xlu0 %v48, 127
    %v204 = vpop.permute.xlu0 %203
    %vm205 = vcmp.lt.s32.totalorder %v50, 127
    %v206 = vsel %vm205, %v202, %v204
    %v207 = vsel %vm205, %v200, %v202
    %v208 = vsel %vm205, %v198, %v200
    %v209 = vsel %vm205, %v204, %v198
    %vm210 = vcmp.lt.s32.totalorder %v50, 511
    %vm211 = vcmp.lt.s32.totalorder %v51, 511
    %vm212 = vcmp.lt.s32.totalorder %v52, 511
    %vm213 = vcmp.lt.s32.totalorder %v53, 511
    %v214 = vsel %vm210, %v208, 0.0
    %v215 = vsel %vm211, %v207, 0.0
    %v216 = vsel %vm212, %v206, 0.0
    %v217 = vsel %vm213, %v209, 0.0
    %s218 = sld [smem:[#allocation2 + $0x4]]
    %v219 = vstv %s218
    %v220 = vmul.f32 %v219, %v214
    %v221 = vmul.f32 %v219, %v215
    %v222 = vmul.f32 %v219, %v216
    %v223 = vmul.f32 %v219, %v217
    %v224 = vadd.f32 %v183, %v220
    %v225 = vadd.f32 %v184, %v221
    %v226 = vadd.f32 %v185, %v222
    %v227 = vadd.f32 %v186, %v223
    %s228 = sld [smem:[#allocation2 + $0xb]]
    %v229 = vstv %s228
    %v230 = vmul.f32 %v229, %v214
    %v231 = vmul.f32 %v229, %v215
    %v232 = vmul.f32 %v229, %v216
    %v233 = vmul.f32 %v229, %v217
    %v234 = vadd.f32 %v193, %v230
    %v235 = vadd.f32 %v194, %v231
    %v236 = vadd.f32 %v195, %v232
    %v237 = vadd.f32 %v196, %v233
    %238 = vrot.lane.b32.xlu0 %v45, 126
    %v239 = vpop.permute.xlu0 %238
    %240 = vrot.lane.b32.xlu0 %v46, 126
    %v241 = vpop.permute.xlu0 %240
    %242 = vrot.lane.b32.xlu0 %v47, 126
    %v243 = vpop.permute.xlu0 %242
    %244 = vrot.lane.b32.xlu0 %v48, 126
    %v245 = vpop.permute.xlu0 %244
    %vm246 = vcmp.lt.s32.totalorder %v50, 126
    %v247 = vsel %vm246, %v243, %v245
    %v248 = vsel %vm246, %v241, %v243
    %v249 = vsel %vm246, %v239, %v241
    %v250 = vsel %vm246, %v245, %v239
    %vm251 = vcmp.lt.s32.totalorder %v50, 510
    %vm252 = vcmp.lt.s32.totalorder %v51, 510
    %vm253 = vcmp.lt.s32.totalorder %v52, 510
    %vm254 = vcmp.lt.s32.totalorder %v53, 510
    %v255 = vsel %vm251, %v249, 0.0
    %v256 = vsel %vm252, %v248, 0.0
    %v257 = vsel %vm253, %v247, 0.0
    %v258 = vsel %vm254, %v250, 0.0
    %s259 = sld [smem:[#allocation2 + $0x5]]
    %v260 = vstv %s259
    %v261 = vmul.f32 %v260, %v255
    %v262 = vmul.f32 %v260, %v256
    %v263 = vmul.f32 %v260, %v257
    %v264 = vmul.f32 %v260, %v258
    %v265 = vadd.f32 %v224, %v261
    %v266 = vadd.f32 %v225, %v262
    %v267 = vadd.f32 %v226, %v263
    %v268 = vadd.f32 %v227, %v264
    %s269 = sld [smem:[#allocation2 + $0xc]]
    %v270 = vstv %s269
    %v271 = vmul.f32 %v270, %v255
    %v272 = vmul.f32 %v270, %v256
    %v273 = vmul.f32 %v270, %v257
    %v274 = vmul.f32 %v270, %v258
    %v275 = vadd.f32 %v234, %v271
    %v276 = vadd.f32 %v235, %v272
    %v277 = vadd.f32 %v236, %v273
    %v278 = vadd.f32 %v237, %v274
    %279 = vrot.lane.b32.xlu0 %v45, 125
    %v280 = vpop.permute.xlu0 %279
    %281 = vrot.lane.b32.xlu0 %v46, 125
    %v282 = vpop.permute.xlu0 %281
    %283 = vrot.lane.b32.xlu0 %v47, 125
    %v284 = vpop.permute.xlu0 %283
    %285 = vrot.lane.b32.xlu0 %v48, 125
    %v286 = vpop.permute.xlu0 %285
    %vm287 = vcmp.lt.s32.totalorder %v50, 125
    %v288 = vsel %vm287, %v284, %v286
    %v289 = vsel %vm287, %v282, %v284
    %v290 = vsel %vm287, %v280, %v282
    %v291 = vsel %vm287, %v286, %v280
    %vm292 = vcmp.lt.s32.totalorder %v50, 509
    %vm293 = vcmp.lt.s32.totalorder %v51, 509
    %vm294 = vcmp.lt.s32.totalorder %v52, 509
    %vm295 = vcmp.lt.s32.totalorder %v53, 509
    %v296 = vsel %vm292, %v290, 0.0
    %v297 = vsel %vm293, %v289, 0.0
    %v298 = vsel %vm294, %v288, 0.0
    %v299 = vsel %vm295, %v291, 0.0
    %s300 = sld [smem:[#allocation2 + $0x6]]
    %v301 = vstv %s300
    %v302 = vmul.f32 %v301, %v296
    %v303 = vmul.f32 %v301, %v297
    %v304 = vmul.f32 %v301, %v298
    %v305 = vmul.f32 %v301, %v299
    %v306 = vadd.f32 %v265, %v302
    %v307 = vadd.f32 %v266, %v303
    %v308 = vadd.f32 %v267, %v304
    %v309 = vadd.f32 %v268, %v305
    %s310 = sld [smem:[#allocation2 + $0xd]]
    %v311 = vstv %s310
    %v312 = vmul.f32 %v311, %v296
    %v313 = vmul.f32 %v311, %v297
    %v314 = vmul.f32 %v311, %v298
    %v315 = vmul.f32 %v311, %v299
    %v316 = vadd.f32 %v275, %v312
    %v317 = vadd.f32 %v276, %v313
    %v318 = vadd.f32 %v277, %v314
    %v319 = vadd.f32 %v278, %v315
    %s320 = sld [smem:[#allocation2 + $0xe]]
    %v321 = vstv %s320
    %v322 = vadd.f32 %v306, %v321
    %v323 = vadd.f32 %v307, %v321
    %v324 = vadd.f32 %v308, %v321
    %v325 = vadd.f32 %v309, %v321
    %v326 = vmax.f32 %v322, 0.0
    %v327 = vmax.f32 %v323, 0.0
    %v328 = vmax.f32 %v324, 0.0
    %v329 = vmax.f32 %v325, 0.0
    %s330 = sld [smem:[#allocation2 + $0xf]]
    %v331 = vstv %s330
    %v332 = vadd.f32 %v316, %v331
    %v333 = vadd.f32 %v317, %v331
    %v334 = vadd.f32 %v318, %v331
    %v335 = vadd.f32 %v319, %v331
    %v336 = vmax.f32 %v332, 0.0
    %v337 = vmax.f32 %v333, 0.0
    %v338 = vmax.f32 %v334, 0.0
    %v339 = vmax.f32 %v335, 0.0
    %v340 = vld [vmem:[%s3] sm:$0xf]
    %v341 = vpack.c.bf16 %v326, %v326
    %v342 = vpack.c.bf16 %v327, %v327
    %v343 = vpack.c.bf16 %v328, %v328
    %v344 = vpack.c.bf16 %v329, %v329
    %v345 = vpack.c.bf16 %v336, %v336
    %v346 = vpack.c.bf16 %v337, %v337
    %v347 = vpack.c.bf16 %v338, %v338
    %v348 = vpack.c.bf16 %v339, %v339
    %v349 = vld [vmem:[#allocation5] sm:$0xf]
    %v350 = vld [vmem:[#allocation5 + $0x4] sm:$0xf]
    %v351 = vld [vmem:[#allocation5 + $0x8] sm:$0xf]
    %v352 = vld [vmem:[#allocation5 + $0xc] sm:$0xf]
    %v353 = vld [vmem:[#allocation5 + $0x10] sm:$0xf]
    %v354 = vld [vmem:[#allocation5 + $0x14] sm:$0xf]
    %v355 = vld [vmem:[#allocation5 + $0x18] sm:$0xf]
    %v356 = vld [vmem:[#allocation5 + $0x1c] sm:$0xf]
    %v357 = vld [vmem:[#allocation5 + $0x20] sm:$0xf]
    %v358 = vld [vmem:[#allocation5 + $0x24] sm:$0xf]
    %v359 = vld [vmem:[#allocation5 + $0x28] sm:$0xf]
    %v360 = vld [vmem:[#allocation5 + $0x2c] sm:$0xf]
    %v361 = vld [vmem:[#allocation5 + $0x30] sm:$0xf]
    %v362 = vld [vmem:[#allocation5 + $0x34] sm:$0xf]
    %v363 = vld [vmem:[#allocation5 + $0x38] sm:$0xf]
    %v364 = vld [vmem:[#allocation5 + $0x3c] sm:$0xf]
    %v365 = vld [vmem:[#allocation5 + $0x40] sm:$0xf]
    %v366 = vld [vmem:[#allocation5 + $0x44] sm:$0xf]
    %v367 = vld [vmem:[#allocation5 + $0x48] sm:$0xf]
    %v368 = vld [vmem:[#allocation5 + $0x4c] sm:$0xf]
    %v369 = vld [vmem:[#allocation5 + $0x50] sm:$0xf]
    %v370 = vld [vmem:[#allocation5 + $0x54] sm:$0xf]
    %v371 = vld [vmem:[#allocation5 + $0x58] sm:$0xf]
    %v372 = vld [vmem:[#allocation5 + $0x5c] sm:$0xf]
    %v373 = vld [vmem:[#allocation5 + $0x60] sm:$0xf]
    %v374 = vld [vmem:[#allocation5 + $0x64] sm:$0xf]
    %v375 = vld [vmem:[#allocation5 + $0x68] sm:$0xf]
    %v376 = vld [vmem:[#allocation5 + $0x6c] sm:$0xf]
    %v377 = vld [vmem:[#allocation5 + $0x70] sm:$0xf]
    %v378 = vld [vmem:[#allocation5 + $0x74] sm:$0xf]
    %v379 = vld [vmem:[#allocation5 + $0x78] sm:$0xf]
    %v380 = vld [vmem:[#allocation5 + $0x7c] sm:$0xf]
    %v381 = vld [vmem:[#allocation5 + $0x80] sm:$0xf]
    %v382 = vld [vmem:[#allocation5 + $0x84] sm:$0xf]
    %v383 = vld [vmem:[#allocation5 + $0x88] sm:$0xf]
    %v384 = vld [vmem:[#allocation5 + $0x8c] sm:$0xf]
    %v385 = vld [vmem:[#allocation5 + $0x90] sm:$0xf]
    %v386 = vld [vmem:[#allocation5 + $0x94] sm:$0xf]
    %v387 = vld [vmem:[#allocation5 + $0x98] sm:$0xf]
    %v388 = vld [vmem:[#allocation5 + $0x9c] sm:$0xf]
    %v389 = vld [vmem:[#allocation5 + $0xa0] sm:$0xf]
    %v390 = vld [vmem:[#allocation5 + $0xa4] sm:$0xf]
    %v391 = vld [vmem:[#allocation5 + $0xa8] sm:$0xf]
    %v392 = vld [vmem:[#allocation5 + $0xac] sm:$0xf]
    %v393 = vld [vmem:[#allocation5 + $0xb0] sm:$0xf]
    %v394 = vld [vmem:[#allocation5 + $0xb4] sm:$0xf]
    %v395 = vld [vmem:[#allocation5 + $0xb8] sm:$0xf]
    %v396 = vld [vmem:[#allocation5 + $0xbc] sm:$0xf]
    %v397 = vld [vmem:[#allocation5 + $0xc0] sm:$0xf]
    %v398 = vld [vmem:[#allocation5 + $0xc4] sm:$0xf]
    %v399 = vld [vmem:[#allocation5 + $0xc8] sm:$0xf]
    %v400 = vld [vmem:[#allocation5 + $0xcc] sm:$0xf]
    %v401 = vld [vmem:[#allocation5 + $0xd0] sm:$0xf]
    %v402 = vld [vmem:[#allocation5 + $0xd4] sm:$0xf]
    %v403 = vld [vmem:[#allocation5 + $0xd8] sm:$0xf]
    %v404 = vld [vmem:[#allocation5 + $0xdc] sm:$0xf]
    %v405 = vld [vmem:[#allocation5 + $0xe0] sm:$0xf]
    %v406 = vld [vmem:[#allocation5 + $0xe4] sm:$0xf]
    %v407 = vld [vmem:[#allocation5 + $0xe8] sm:$0xf]
    %v408 = vld [vmem:[#allocation5 + $0xec] sm:$0xf]
    %v409 = vld [vmem:[#allocation5 + $0xf0] sm:$0xf]
    %v410 = vld [vmem:[#allocation5 + $0xf4] sm:$0xf]
    %v411 = vld [vmem:[#allocation5 + $0xf8] sm:$0xf]
    %v412 = vld [vmem:[#allocation5 + $0xfc] sm:$0xf]
    %v413 = vld [vmem:[#allocation5 + $0x100] sm:$0xf]
    %v414 = vld [vmem:[#allocation5 + $0x104] sm:$0xf]
    %v415 = vld [vmem:[#allocation5 + $0x108] sm:$0xf]
    %v416 = vld [vmem:[#allocation5 + $0x10c] sm:$0xf]
    %v417 = vld [vmem:[#allocation5 + $0x110] sm:$0xf]
    %v418 = vld [vmem:[#allocation5 + $0x114] sm:$0xf]
    %v419 = vld [vmem:[#allocation5 + $0x118] sm:$0xf]
    %v420 = vld [vmem:[#allocation5 + $0x11c] sm:$0xf]
    %v421 = vld [vmem:[#allocation5 + $0x120] sm:$0xf]
    %v422 = vld [vmem:[#allocation5 + $0x124] sm:$0xf]
    %v423 = vld [vmem:[#allocation5 + $0x128] sm:$0xf]
    %v424 = vld [vmem:[#allocation5 + $0x12c] sm:$0xf]
    %v425 = vld [vmem:[#allocation5 + $0x130] sm:$0xf]
    %v426 = vld [vmem:[#allocation5 + $0x134] sm:$0xf]
    %v427 = vld [vmem:[#allocation5 + $0x138] sm:$0xf]
    %v428 = vld [vmem:[#allocation5 + $0x13c] sm:$0xf]
    %v429 = vld [vmem:[#allocation5 + $0x140] sm:$0xf]
    %v430 = vld [vmem:[#allocation5 + $0x144] sm:$0xf]
    %v431 = vld [vmem:[#allocation5 + $0x148] sm:$0xf]
    %v432 = vld [vmem:[#allocation5 + $0x14c] sm:$0xf]
    %v433 = vld [vmem:[#allocation5 + $0x150] sm:$0xf]
    %v434 = vld [vmem:[#allocation5 + $0x154] sm:$0xf]
    %v435 = vld [vmem:[#allocation5 + $0x158] sm:$0xf]
    %v436 = vld [vmem:[#allocation5 + $0x15c] sm:$0xf]
    %v437 = vld [vmem:[#allocation5 + $0x160] sm:$0xf]
    %v438 = vld [vmem:[#allocation5 + $0x164] sm:$0xf]
    %v439 = vld [vmem:[#allocation5 + $0x168] sm:$0xf]
    %v440 = vld [vmem:[#allocation5 + $0x16c] sm:$0xf]
    %v441 = vld [vmem:[#allocation5 + $0x170] sm:$0xf]
    %v442 = vld [vmem:[#allocation5 + $0x174] sm:$0xf]
    %v443 = vld [vmem:[#allocation5 + $0x178] sm:$0xf]
    %v444 = vld [vmem:[#allocation5 + $0x17c] sm:$0xf]
    %v445 = vld [vmem:[#allocation5 + $0x180] sm:$0xf]
    %v446 = vld [vmem:[#allocation5 + $0x184] sm:$0xf]
    %v447 = vld [vmem:[#allocation5 + $0x188] sm:$0xf]
    %v448 = vld [vmem:[#allocation5 + $0x18c] sm:$0xf]
    %v449 = vld [vmem:[#allocation5 + $0x190] sm:$0xf]
    %v450 = vld [vmem:[#allocation5 + $0x194] sm:$0xf]
    %v451 = vld [vmem:[#allocation5 + $0x198] sm:$0xf]
    %v452 = vld [vmem:[#allocation5 + $0x19c] sm:$0xf]
    %v453 = vld [vmem:[#allocation5 + $0x1a0] sm:$0xf]
    %v454 = vld [vmem:[#allocation5 + $0x1a4] sm:$0xf]
    %v455 = vld [vmem:[#allocation5 + $0x1a8] sm:$0xf]
    %v456 = vld [vmem:[#allocation5 + $0x1ac] sm:$0xf]
    %v457 = vld [vmem:[#allocation5 + $0x1b0] sm:$0xf]
    %v458 = vld [vmem:[#allocation5 + $0x1b4] sm:$0xf]
    %v459 = vld [vmem:[#allocation5 + $0x1b8] sm:$0xf]
    %v460 = vld [vmem:[#allocation5 + $0x1bc] sm:$0xf]
    %v461 = vld [vmem:[#allocation5 + $0x1c0] sm:$0xf]
    %v462 = vld [vmem:[#allocation5 + $0x1c4] sm:$0xf]
    %v463 = vld [vmem:[#allocation5 + $0x1c8] sm:$0xf]
    %v464 = vld [vmem:[#allocation5 + $0x1cc] sm:$0xf]
    %v465 = vld [vmem:[#allocation5 + $0x1d0] sm:$0xf]
    %v466 = vld [vmem:[#allocation5 + $0x1d4] sm:$0xf]
    %v467 = vld [vmem:[#allocation5 + $0x1d8] sm:$0xf]
    %v468 = vld [vmem:[#allocation5 + $0x1dc] sm:$0xf]
    %v469 = vld [vmem:[#allocation5 + $0x1e0] sm:$0xf]
    %v470 = vld [vmem:[#allocation5 + $0x1e4] sm:$0xf]
    %v471 = vld [vmem:[#allocation5 + $0x1e8] sm:$0xf]
    %v472 = vld [vmem:[#allocation5 + $0x1ec] sm:$0xf]
    %v473 = vld [vmem:[#allocation5 + $0x1f0] sm:$0xf]
    %v474 = vld [vmem:[#allocation5 + $0x1f4] sm:$0xf]
    %v475 = vld [vmem:[#allocation5 + $0x1f8] sm:$0xf]
    %v476 = vld [vmem:[#allocation5 + $0x1fc] sm:$0xf]
    %v477 = vlaneseq
    %v478 = vshrl.u32 %v477, 7
    %v479 = vsub.s32 0, %v478
    %v480 = vrot.slane %v340, %v479
    %v609 = vunpack.c.l.b16 %v349
    %v610 = vunpack.c.l.b16 %v350
    %v611 = vunpack.c.l.b16 %v351
    %v612 = vunpack.c.l.b16 %v352
    %v613 = vunpack.c.l.b16 %v353
    %v614 = vunpack.c.l.b16 %v354
    %v615 = vunpack.c.l.b16 %v355
    %v616 = vunpack.c.l.b16 %v356
    %v617 = vunpack.c.l.b16 %v357
    %v618 = vunpack.c.l.b16 %v358
    %v619 = vunpack.c.l.b16 %v359
    %v620 = vunpack.c.l.b16 %v360
    %v621 = vunpack.c.l.b16 %v361
    %v622 = vunpack.c.l.b16 %v362
    %v623 = vunpack.c.l.b16 %v363
    %v624 = vunpack.c.l.b16 %v364
    %v625 = vunpack.c.l.b16 %v365
    %v626 = vunpack.c.l.b16 %v366
    %v627 = vunpack.c.l.b16 %v367
    %v628 = vunpack.c.l.b16 %v368
    %v629 = vunpack.c.l.b16 %v369
    %v630 = vunpack.c.l.b16 %v370
    %v631 = vunpack.c.l.b16 %v371
    %v632 = vunpack.c.l.b16 %v372
    %v633 = vunpack.c.l.b16 %v373
    %v634 = vunpack.c.l.b16 %v374
    %v635 = vunpack.c.l.b16 %v375
    %v636 = vunpack.c.l.b16 %v376
    %v637 = vunpack.c.l.b16 %v377
    %v638 = vunpack.c.l.b16 %v378
    %v639 = vunpack.c.l.b16 %v379
    %v640 = vunpack.c.l.b16 %v380
    %v641 = vunpack.c.l.b16 %v381
    %v642 = vunpack.c.l.b16 %v382
    %v643 = vunpack.c.l.b16 %v383
    %v644 = vunpack.c.l.b16 %v384
    %v645 = vunpack.c.l.b16 %v385
    %v646 = vunpack.c.l.b16 %v386
    %v647 = vunpack.c.l.b16 %v387
    %v648 = vunpack.c.l.b16 %v388
    %v649 = vunpack.c.l.b16 %v389
    %v650 = vunpack.c.l.b16 %v390
    %v651 = vunpack.c.l.b16 %v391
    %v652 = vunpack.c.l.b16 %v392
    %v653 = vunpack.c.l.b16 %v393
    %v654 = vunpack.c.l.b16 %v394
    %v655 = vunpack.c.l.b16 %v395
    %v656 = vunpack.c.l.b16 %v396
    %v657 = vunpack.c.l.b16 %v397
    %v658 = vunpack.c.l.b16 %v398
    %v659 = vunpack.c.l.b16 %v399
    %v660 = vunpack.c.l.b16 %v400
    %v661 = vunpack.c.l.b16 %v401
    %v662 = vunpack.c.l.b16 %v402
    %v663 = vunpack.c.l.b16 %v403
    %v664 = vunpack.c.l.b16 %v404
    %v665 = vunpack.c.l.b16 %v405
    %v666 = vunpack.c.l.b16 %v406
    %v667 = vunpack.c.l.b16 %v407
    %v668 = vunpack.c.l.b16 %v408
    %v669 = vunpack.c.l.b16 %v409
    %v670 = vunpack.c.l.b16 %v410
    %v671 = vunpack.c.l.b16 %v411
    %v672 = vunpack.c.l.b16 %v412
    %v673 = vunpack.c.l.b16 %v413
    %v674 = vunpack.c.l.b16 %v414
    %v675 = vunpack.c.l.b16 %v415
    %v676 = vunpack.c.l.b16 %v416
    %v677 = vunpack.c.l.b16 %v417
    %v678 = vunpack.c.l.b16 %v418
    %v679 = vunpack.c.l.b16 %v419
    %v680 = vunpack.c.l.b16 %v420
    %v681 = vunpack.c.l.b16 %v421
    %v682 = vunpack.c.l.b16 %v422
    %v683 = vunpack.c.l.b16 %v423
    %v684 = vunpack.c.l.b16 %v424
    %v685 = vunpack.c.l.b16 %v425
    %v686 = vunpack.c.l.b16 %v426
    %v687 = vunpack.c.l.b16 %v427
    %v688 = vunpack.c.l.b16 %v428
    %v689 = vunpack.c.l.b16 %v429
    %v690 = vunpack.c.l.b16 %v430
    %v691 = vunpack.c.l.b16 %v431
    %v692 = vunpack.c.l.b16 %v432
    %v693 = vunpack.c.l.b16 %v433
    %v694 = vunpack.c.l.b16 %v434
    %v695 = vunpack.c.l.b16 %v435
    %v696 = vunpack.c.l.b16 %v436
    %v697 = vunpack.c.l.b16 %v437
    %v698 = vunpack.c.l.b16 %v438
    %v699 = vunpack.c.l.b16 %v439
    %v700 = vunpack.c.l.b16 %v440
    %v701 = vunpack.c.l.b16 %v441
    %v702 = vunpack.c.l.b16 %v442
    %v703 = vunpack.c.l.b16 %v443
    %v704 = vunpack.c.l.b16 %v444
    %v705 = vunpack.c.l.b16 %v445
    %v706 = vunpack.c.l.b16 %v446
    %v707 = vunpack.c.l.b16 %v447
    %v708 = vunpack.c.l.b16 %v448
    %v709 = vunpack.c.l.b16 %v449
    %v710 = vunpack.c.l.b16 %v450
    %v711 = vunpack.c.l.b16 %v451
    %v712 = vunpack.c.l.b16 %v452
    %v713 = vunpack.c.l.b16 %v453
    %v714 = vunpack.c.l.b16 %v454
    %v715 = vunpack.c.l.b16 %v455
    %v716 = vunpack.c.l.b16 %v456
    %v717 = vunpack.c.l.b16 %v457
    %v718 = vunpack.c.l.b16 %v458
    %v719 = vunpack.c.l.b16 %v459
    %v720 = vunpack.c.l.b16 %v460
    %v721 = vunpack.c.l.b16 %v461
    %v722 = vunpack.c.l.b16 %v462
    %v723 = vunpack.c.l.b16 %v463
    %v724 = vunpack.c.l.b16 %v464
    %v725 = vunpack.c.l.b16 %v465
    %v726 = vunpack.c.l.b16 %v466
    %v727 = vunpack.c.l.b16 %v467
    %v728 = vunpack.c.l.b16 %v468
    %v729 = vunpack.c.l.b16 %v469
    %v730 = vunpack.c.l.b16 %v470
    %v731 = vunpack.c.l.b16 %v471
    %v732 = vunpack.c.l.b16 %v472
    %v733 = vunpack.c.l.b16 %v473
    %v734 = vunpack.c.l.b16 %v474
    %v735 = vunpack.c.l.b16 %v475
    %v736 = vunpack.c.l.b16 %v476
    %v737 = vpack.c.b16 %v610, %v609
    %v738 = vpack.c.b16 %v612, %v611
    %v739 = vpack.c.b16 %v614, %v613
    %v740 = vpack.c.b16 %v616, %v615
    %v741 = vpack.c.b16 %v618, %v617
    %v742 = vpack.c.b16 %v620, %v619
    %v743 = vpack.c.b16 %v622, %v621
    %v744 = vpack.c.b16 %v624, %v623
    %v745 = vpack.c.b16 %v626, %v625
    %v746 = vpack.c.b16 %v628, %v627
    %v747 = vpack.c.b16 %v630, %v629
    %v748 = vpack.c.b16 %v632, %v631
    %v749 = vpack.c.b16 %v634, %v633
    %v750 = vpack.c.b16 %v636, %v635
    %v751 = vpack.c.b16 %v638, %v637
    %v752 = vpack.c.b16 %v640, %v639
    %v753 = vpack.c.b16 %v642, %v641
    %v754 = vpack.c.b16 %v644, %v643
    %v755 = vpack.c.b16 %v646, %v645
    %v756 = vpack.c.b16 %v648, %v647
    %v757 = vpack.c.b16 %v650, %v649
    %v758 = vpack.c.b16 %v652, %v651
    %v759 = vpack.c.b16 %v654, %v653
    %v760 = vpack.c.b16 %v656, %v655
    %v761 = vpack.c.b16 %v658, %v657
    %v762 = vpack.c.b16 %v660, %v659
    %v763 = vpack.c.b16 %v662, %v661
    %v764 = vpack.c.b16 %v664, %v663
    %v765 = vpack.c.b16 %v666, %v665
    %v766 = vpack.c.b16 %v668, %v667
    %v767 = vpack.c.b16 %v670, %v669
    %v768 = vpack.c.b16 %v672, %v671
    %v769 = vpack.c.b16 %v674, %v673
    %v770 = vpack.c.b16 %v676, %v675
    %v771 = vpack.c.b16 %v678, %v677
    %v772 = vpack.c.b16 %v680, %v679
    %v773 = vpack.c.b16 %v682, %v681
    %v774 = vpack.c.b16 %v684, %v683
    %v775 = vpack.c.b16 %v686, %v685
    %v776 = vpack.c.b16 %v688, %v687
    %v777 = vpack.c.b16 %v690, %v689
    %v778 = vpack.c.b16 %v692, %v691
    %v779 = vpack.c.b16 %v694, %v693
    %v780 = vpack.c.b16 %v696, %v695
    %v781 = vpack.c.b16 %v698, %v697
    %v782 = vpack.c.b16 %v700, %v699
    %v783 = vpack.c.b16 %v702, %v701
    %v784 = vpack.c.b16 %v704, %v703
    %v785 = vpack.c.b16 %v706, %v705
    %v786 = vpack.c.b16 %v708, %v707
    %v787 = vpack.c.b16 %v710, %v709
    %v788 = vpack.c.b16 %v712, %v711
    %v789 = vpack.c.b16 %v714, %v713
    %v790 = vpack.c.b16 %v716, %v715
    %v791 = vpack.c.b16 %v718, %v717
    %v792 = vpack.c.b16 %v720, %v719
    %v793 = vpack.c.b16 %v722, %v721
    %v794 = vpack.c.b16 %v724, %v723
    %v795 = vpack.c.b16 %v726, %v725
    %v796 = vpack.c.b16 %v728, %v727
    %v797 = vpack.c.b16 %v730, %v729
    %v798 = vpack.c.b16 %v732, %v731
    %v799 = vpack.c.b16 %v734, %v733
    %v800 = vpack.c.b16 %v736, %v735
    %865 = vmatprep.subr.bf16.mxu0 0
    %866 = vmatpush1.bf16.msra.mxu0 %v737
    %867 = vmatprep.subr.bf16.mxu0 0
    %868 = vmatpush1.bf16.msra.mxu0 %v738
    %869 = vmatprep.subr.bf16.mxu0 0
    %870 = vmatpush1.bf16.msra.mxu0 %v739
    %871 = vmatprep.subr.bf16.mxu0 0
    %872 = vmatpush1.bf16.msra.mxu0 %v740
    %873 = vmatprep.subr.bf16.mxu0 0
    %874 = vmatpush1.bf16.msra.mxu0 %v741
    %875 = vmatprep.subr.bf16.mxu0 0
    %876 = vmatpush1.bf16.msra.mxu0 %v742
    %877 = vmatprep.subr.bf16.mxu0 0
    %878 = vmatpush1.bf16.msra.mxu0 %v743
    %879 = vmatprep.subr.bf16.mxu0 0
    %880 = vmatpush1.bf16.msra.mxu0 %v744
    %881 = vmatprep.subr.bf16.mxu0 0
    %882 = vmatpush1.bf16.msra.mxu0 %v745
    %883 = vmatprep.subr.bf16.mxu0 0
    %884 = vmatpush1.bf16.msra.mxu0 %v746
    %885 = vmatprep.subr.bf16.mxu0 0
    %886 = vmatpush1.bf16.msra.mxu0 %v747
    %887 = vmatprep.subr.bf16.mxu0 0
    %888 = vmatpush1.bf16.msra.mxu0 %v748
    %889 = vmatprep.subr.bf16.mxu0 0
    %890 = vmatpush1.bf16.msra.mxu0 %v749
    %891 = vmatprep.subr.bf16.mxu0 0
    %892 = vmatpush1.bf16.msra.mxu0 %v750
    %893 = vmatprep.subr.bf16.mxu0 0
    %894 = vmatpush1.bf16.msra.mxu0 %v751
    %895 = vmatprep.subr.bf16.mxu0 0
    %896 = vmatpush1.bf16.msra.mxu0 %v752
    %897 = vmatprep.mubr.bf16.mxu0 %v342
    %898 = vmatmul.mubr.bf16.gmra.mrb[0].mxu0 %v341
    %v899 = vpop.f32.mrb[0].mxu0
    %v900 = vadd.f32 %v480, %v899
    %v901 = vpop.f32.mrb[0].mxu0
    %v902 = vpop.f32.mrb[0].mxu0
    %v903 = vpop.f32.mrb[0].mxu0
    %904 = vdwg.mxu0
    %905 = vmatprep.subr.bf16.mxu0 0
    %906 = vmatpush1.bf16.msra.mxu0 %v753
    %907 = vmatprep.subr.bf16.mxu0 0
    %908 = vmatpush1.bf16.msra.mxu0 %v754
    %909 = vmatprep.subr.bf16.mxu0 0
    %910 = vmatpush1.bf16.msra.mxu0 %v755
    %911 = vmatprep.subr.bf16.mxu0 0
    %912 = vmatpush1.bf16.msra.mxu0 %v756
    %913 = vmatprep.subr.bf16.mxu0 0
    %914 = vmatpush1.bf16.msra.mxu0 %v757
    %915 = vmatprep.subr.bf16.mxu0 0
    %916 = vmatpush1.bf16.msra.mxu0 %v758
    %917 = vmatprep.subr.bf16.mxu0 0
    %918 = vmatpush1.bf16.msra.mxu0 %v759
    %919 = vmatprep.subr.bf16.mxu0 0
    %920 = vmatpush1.bf16.msra.mxu0 %v760
    %921 = vmatprep.subr.bf16.mxu0 0
    %922 = vmatpush1.bf16.msra.mxu0 %v761
    %923 = vmatprep.subr.bf16.mxu0 0
    %924 = vmatpush1.bf16.msra.mxu0 %v762
    %925 = vmatprep.subr.bf16.mxu0 0
    %926 = vmatpush1.bf16.msra.mxu0 %v763
    %927 = vmatprep.subr.bf16.mxu0 0
    %928 = vmatpush1.bf16.msra.mxu0 %v764
    %929 = vmatprep.subr.bf16.mxu0 0
    %930 = vmatpush1.bf16.msra.mxu0 %v765
    %931 = vmatprep.subr.bf16.mxu0 0
    %932 = vmatpush1.bf16.msra.mxu0 %v766
    %933 = vmatprep.subr.bf16.mxu0 0
    %934 = vmatpush1.bf16.msra.mxu0 %v767
    %935 = vmatprep.subr.bf16.mxu0 0
    %936 = vmatpush1.bf16.msra.mxu0 %v768
    %937 = vmatprep.mubr.bf16.mxu0 %v344
    %938 = vmatmul.mubr.bf16.gmra.mrb[0].mxu0 %v343
    %v939 = vpop.f32.mrb[0].mxu0
    %v940 = vadd.f32 %v900, %v939
    %v941 = vpop.f32.mrb[0].mxu0
    %v942 = vpop.f32.mrb[0].mxu0
    %v943 = vpop.f32.mrb[0].mxu0
    %944 = vdwg.mxu0
    %945 = vmatprep.subr.bf16.mxu0 0
    %946 = vmatpush1.bf16.msra.mxu0 %v769
    %947 = vmatprep.subr.bf16.mxu0 0
    %948 = vmatpush1.bf16.msra.mxu0 %v770
    %949 = vmatprep.subr.bf16.mxu0 0
    %950 = vmatpush1.bf16.msra.mxu0 %v771
    %951 = vmatprep.subr.bf16.mxu0 0
    %952 = vmatpush1.bf16.msra.mxu0 %v772
    %953 = vmatprep.subr.bf16.mxu0 0
    %954 = vmatpush1.bf16.msra.mxu0 %v773
    %955 = vmatprep.subr.bf16.mxu0 0
    %956 = vmatpush1.bf16.msra.mxu0 %v774
    %957 = vmatprep.subr.bf16.mxu0 0
    %958 = vmatpush1.bf16.msra.mxu0 %v775
    %959 = vmatprep.subr.bf16.mxu0 0
    %960 = vmatpush1.bf16.msra.mxu0 %v776
    %961 = vmatprep.subr.bf16.mxu0 0
    %962 = vmatpush1.bf16.msra.mxu0 %v777
    %963 = vmatprep.subr.bf16.mxu0 0
    %964 = vmatpush1.bf16.msra.mxu0 %v778
    %965 = vmatprep.subr.bf16.mxu0 0
    %966 = vmatpush1.bf16.msra.mxu0 %v779
    %967 = vmatprep.subr.bf16.mxu0 0
    %968 = vmatpush1.bf16.msra.mxu0 %v780
    %969 = vmatprep.subr.bf16.mxu0 0
    %970 = vmatpush1.bf16.msra.mxu0 %v781
    %971 = vmatprep.subr.bf16.mxu0 0
    %972 = vmatpush1.bf16.msra.mxu0 %v782
    %973 = vmatprep.subr.bf16.mxu0 0
    %974 = vmatpush1.bf16.msra.mxu0 %v783
    %975 = vmatprep.subr.bf16.mxu0 0
    %976 = vmatpush1.bf16.msra.mxu0 %v784
    %977 = vmatprep.mubr.bf16.mxu0 %v346
    %978 = vmatmul.mubr.bf16.gmra.mrb[0].mxu0 %v345
    %v979 = vpop.f32.mrb[0].mxu0
    %v980 = vadd.f32 %v940, %v979
    %v981 = vpop.f32.mrb[0].mxu0
    %v982 = vpop.f32.mrb[0].mxu0
    %v983 = vpop.f32.mrb[0].mxu0
    %984 = vdwg.mxu0
    %985 = vmatprep.subr.bf16.mxu0 0
    %986 = vmatpush1.bf16.msra.mxu0 %v785
    %987 = vmatprep.subr.bf16.mxu0 0
    %988 = vmatpush1.bf16.msra.mxu0 %v786
    %989 = vmatprep.subr.bf16.mxu0 0
    %990 = vmatpush1.bf16.msra.mxu0 %v787
    %991 = vmatprep.subr.bf16.mxu0 0
    %992 = vmatpush1.bf16.msra.mxu0 %v788
    %993 = vmatprep.subr.bf16.mxu0 0
    %994 = vmatpush1.bf16.msra.mxu0 %v789
    %995 = vmatprep.subr.bf16.mxu0 0
    %996 = vmatpush1.bf16.msra.mxu0 %v790
    %997 = vmatprep.subr.bf16.mxu0 0
    %998 = vmatpush1.bf16.msra.mxu0 %v791
    %999 = vmatprep.subr.bf16.mxu0 0
    %1000 = vmatpush1.bf16.msra.mxu0 %v792
    %1001 = vmatprep.subr.bf16.mxu0 0
    %1002 = vmatpush1.bf16.msra.mxu0 %v793
    %1003 = vmatprep.subr.bf16.mxu0 0
    %1004 = vmatpush1.bf16.msra.mxu0 %v794
    %1005 = vmatprep.subr.bf16.mxu0 0
    %1006 = vmatpush1.bf16.msra.mxu0 %v795
    %1007 = vmatprep.subr.bf16.mxu0 0
    %1008 = vmatpush1.bf16.msra.mxu0 %v796
    %1009 = vmatprep.subr.bf16.mxu0 0
    %1010 = vmatpush1.bf16.msra.mxu0 %v797
    %1011 = vmatprep.subr.bf16.mxu0 0
    %1012 = vmatpush1.bf16.msra.mxu0 %v798
    %1013 = vmatprep.subr.bf16.mxu0 0
    %1014 = vmatpush1.bf16.msra.mxu0 %v799
    %1015 = vmatprep.subr.bf16.mxu0 0
    %1016 = vmatpush1.bf16.msra.mxu0 %v800
    %1017 = vmatprep.mubr.bf16.mxu0 %v348
    %1018 = vmatmul.mubr.bf16.gmra.mrb[0].mxu0 %v347
    %v1019 = vpop.f32.mrb[0].mxu0
    %v1020 = vadd.f32 %v980, %v1019
    %v1021 = vpop.f32.mrb[0].mxu0
    %v1022 = vpop.f32.mrb[0].mxu0
    %v1023 = vpop.f32.mrb[0].mxu0
    %1024 = vdwg.mxu0
    %v1025 = vmax.f32 %v1020, 0.0
    %v1026 = vlaneseq
    %v1027 = vshrl.u32 %v1026, 7
    %v1028 = vsub.s32 2, %v1027
    %v1029 = vrot.slane %v340, %v1028
    %v1030 = vmul.f32 %v1025, %v1029
    %vm1031 = vcmask 261120
    %v1032 = vsel %vm1031, %v1030, 0.0
    %1033 = vadd.xlane.f32.xlu0 %v1032
    %v1034 = vpop.xlane.xlu0 %1033
    %v1035 = vlaneseq
    %v1036 = vshrl.u32 %v1035, 7
    %v1037 = vsub.s32 3, %v1036
    %v1038 = vrot.slane %v340, %v1037
    %v1039 = vmul.f32 %v1025, %v1038
    %v1040 = vsel %vm1031, %v1039, 0.0
    %1041 = vadd.xlane.f32.xlu0 %v1040
    %v1042 = vpop.xlane.xlu0 %1041
    %vm1043 = vcmask 7168
    %v1044 = vsel %vm1043, %v1034, %v1042
    %v1045 = vlaneseq
    %v1046 = vshrl.u32 %v1045, 7
    %v1047 = vsub.s32 1, %v1046
    %v1048 = vrot.slane %v340, %v1047
    %v1049 = vadd.f32 %v1044, %v1048
    %vm1050 = vcmask 15360
    %v1051 = vsel %vm1050, %v1049, -inf
    %1052 = vmax.xlane.f32.xlu0 %v1051
    %v1053 = vpop.xlane.xlu0 %1052
    %v1054 = vsub.f32 %v1049, %v1053
    %v1055 = vmul.f32 %v1054, 1.442695
    %v1056 = vpow.pop %v1055
    %v1057 = vsel %vm1050, %v1056, 0.0
    %1058 = vadd.xlane.f32.xlu0 %v1057
    %v1059 = vpop.xlane.xlu0 %1058
    %v1060 = vrcp.pop %v1059
    %v1061 = vmul.f32 %v1056, %v1060
    %1062 = vst.msk [vmem:[%s4] sm:$0xff] %vm1050, %v1061
    // Predicated region
    $region26: #{_lambda_.1} parent=1 // pred_check
      _
    $region27: #{_lambda_.1} parent=1 // pred_check_branch
      %1064 = sbr.rel (0) target = $region29
    $region28: #{_lambda_.1} parent=1 // pred_region
      _
    $region29: #{_lambda_.1} parent=1 // pred_fallthru
      _
    // Predicated region
    $region30: #{_lambda_.1} parent=1 // pred_check
      _
    $region31: #{_lambda_.1} parent=1 // pred_check_branch
      %1066 = sbr.rel (0) target = $region33
    $region32: #{_lambda_.1} parent=1 // pred_region
      _
    $region33: #{_lambda_.1} parent=1 // pred_fallthru
      _
    %1067 = vsyncpa [#allocation3], 1
    %1068 = vsyncpa [#allocation4], 1

</llo_original>
